<compile_context>
chip_gen: v6e
topology: v6e:2x2x1
jax: 0.10.0
libtpu: 0.0.40
codegen_flags: <defaults>
</compile_context>

<pallas_src>
import numpy as np
import jax
import jax.numpy as jnp
from jax import lax
from jax.experimental import pallas as pl
from jax.experimental.pallas import tpu as pltpu

_LOG10_INV = float(1.0 / np.log(10.0))


# ----------------------------- module constants -----------------------------

def DCT_mat(size):
    return np.array(
        [[(np.sqrt(1.0 / size) if i == 0 else np.sqrt(2.0 / size))
          * np.cos((j + 0.5) * np.pi * i / size)
          for j in range(size)]
         for i in range(size)],
        dtype=np.float32)


def generate_filter(start, end, size):
    return np.array(
        [[0.0 if i + j > end or i + j <= start else 1.0 for j in range(size)]
         for i in range(size)],
        dtype=np.float32)


# ----------------------------- wrapper-side prep ----------------------------

def _grayscale_scaled(x):
    """(N,3,H,W) -> (N,1,H,W): 0.299R+0.587G+0.114B, then (x+1)*122.5."""
    xg = 0.299 * x[:, 0] + 0.587 * x[:, 1] + 0.114 * x[:, 2]
    return (xg[:, None, :, :] + 1.0) * 122.5


def _unfold_as_conv(xg, S, stride=2, pad=4):
    """nn.Unfold via conv with an explicit identity kernel (exact values).

    xg: (N,1,H,W) -> (S*S, N, oh, ow); channel k = patch element (k//S, k%S)
    (row-major vec of the patch, matching nn.Unfold with C=1)."""
    N, C, H, W = xg.shape
    D2 = S * S
    eye_k = jnp.asarray(np.eye(D2, dtype=np.float32).reshape(D2, 1, S, S))
    patches = lax.conv_general_dilated(
        xg, eye_k,
        window_strides=(stride, stride),
        padding=((pad, pad), (pad, pad)),
        dimension_numbers=("NCHW", "OIHW", "CNHW"),
        precision=lax.Precision.HIGHEST)              # exact patch extraction
    oh = (H + 2 * pad - S) // stride + 1
    ow = (W + 2 * pad - S) // stride + 1
    return patches, oh, ow


def _unfold_patches(x, S, stride=2, pad=4):
    """Gather-based nn.Unfold (reference only). (N,C,H,W)->(N,oh,ow,C,S,S)."""
    N, C, H, W = x.shape
    xp = jnp.pad(x, ((0, 0), (0, 0), (pad, pad), (pad, pad)))
    out_h = (H + 2 * pad - S) // stride + 1
    out_w = (W + 2 * pad - S) // stride + 1
    iy = (jnp.arange(out_h) * stride)[:, None] + jnp.arange(S)[None, :]
    ix = (jnp.arange(out_w) * stride)[:, None] + jnp.arange(S)[None, :]
    p = xp[:, :, iy[:, None, :, None], ix[None, :, None, :]]   # (N,C,oh,ow,S,S)
    return jnp.transpose(p, (0, 2, 3, 1, 4, 5)), out_h, out_w


# --------------------------------- kernel -----------------------------------

def _lfs_kernel(p_ref, k_ref, f_ref, o_ref):
    # p_ref : (PPR*D2, TM)       lane-dense block of packed patch columns
    # k_ref : (PPR*D2, PPR*D2)   kron(kron(D,D), I_PPR)        (resident)
    # f_ref : (PPR*M,  PPR*D2)   kron(filters/ft_num, I_PPR)   (resident)
    # o_ref : (PPR*M,  TM)       lane-dense output block
    dct = jnp.dot(k_ref[...], p_ref[...], preferred_element_type=jnp.float32)
    y = jnp.log(jnp.abs(dct) + 1e-15) * _LOG10_INV      # log10 via EUP ln
    o_ref[...] = jnp.dot(f_ref[...], y,
                         preferred_element_type=jnp.float32).astype(o_ref.dtype)


# ------------------------------- forward pass -------------------------------

def lfs_head_forward(x, learnables, *, window_size, M,
                     block_rows=4096, patch_dtype=jnp.float32):
    """x: (N,3,H,W) f32; learnables: (M,S,S) f32 -> (N, M, size_after, size_after)."""
    S = window_size
    D2 = S * S
    N = x.shape[0]

    # ---- prep (XLA): grayscale, rescale, unfold-as-conv ----------------------
    xg = _grayscale_scaled(x)                              # (N,1,H,W)
    patches, oh, ow = _unfold_as_conv(xg, S)               # (D2, N, oh, ow)
    NP = N * oh * ow
    PT = patches.reshape(D2, NP)                           # col p = vec(patch_p)

    # ---- packing: PPR patches per 128-lane column group ----------------------
    PPR = 128 // D2 if (D2 <= 128 and 128 % D2 == 0) else 1
    lanes, bands = PPR * D2, PPR * M

    rows = -(-NP // PPR)                                   # packed columns
    tm = min(block_rows, ((rows + 127) // 128) * 128)      # lane mult. of 128
    rows_pad = ((rows + tm - 1) // tm) * tm
    np_pad = rows_pad * PPR

    # Pad, then a PURE reshape gives the packed transposed layout
    #   p_t[k*PPR + q, r] = patch_{q*rows_pad + r}[k]      (no extra big copy)
    PT = jnp.pad(PT, ((0, 0), (0, np_pad - NP)))
    p_t = PT.reshape(lanes, rows_pad).astype(patch_dtype)

    # ---- constants computed ONCE: interleaved DCT + folded/normalized filters
    D = DCT_mat(S)
    K = np.kron(D, D)                                      # vec(D P D^T)=K vec(P)
    K_big = jnp.asarray(np.kron(K, np.eye(PPR, dtype=np.float32)),
                        dtype=patch_dtype)                 # (lanes, lanes)

    f_rows = []
    for m in range(M):
        base = generate_filter(S * 2.0 / M * m, S * 2.0 / M * (m + 1), S)
        ft_num = float(base.sum())
        filt = jnp.asarray(base) + (2.0 * jax.nn.sigmoid(learnables[m]) - 1.0)
        f_rows.append((filt / ft_num).reshape(D2))         # 1/ft_num folded in
    FT = jnp.stack(f_rows, axis=0)                         # (M, D2)
    F_big = jnp.kron(FT, jnp.eye(PPR, dtype=jnp.float32))  # (bands, lanes)

    itemsize = jnp.dtype(patch_dtype).itemsize
    cost = pl.CostEstimate(
        flops=2 * rows_pad * lanes * (lanes + bands),
        transcendentals=rows_pad * lanes,
        bytes_accessed=(itemsize * (rows_pad * lanes + lanes * lanes)
                        + 4 * (bands * lanes + rows_pad * bands)),
    )

    def make_in_spec(buffered):
        if buffered and hasattr(pl, "Buffered"):
            try:
                return pl.BlockSpec((lanes, tm), lambda i: (0, i),
                                    pipeline_mode=pl.Buffered(3))
            except TypeError:          # older JAX without pipeline_mode kwarg
                pass
        return pl.BlockSpec((lanes, tm), lambda i: (0, i))

    def call(sem, buffered):
        return pl.pallas_call(
            _lfs_kernel,
            out_shape=jax.ShapeDtypeStruct((bands, rows_pad), jnp.float32),
            grid=(rows_pad // tm,),
            in_specs=[
                make_in_spec(buffered),
                pl.BlockSpec((lanes, lanes), lambda i: (0, 0)),   # resident
                pl.BlockSpec((bands, lanes), lambda i: (0, 0)),   # resident
            ],
            out_specs=pl.BlockSpec((bands, tm), lambda i: (0, i)),
            compiler_params=pltpu.CompilerParams(dimension_semantics=(sem,)),
            cost_estimate=cost,
        )(p_t, K_big, F_big)

    # v7x: split the HBM-bound grid across both TensorCores; otherwise / on
    # failure fall back to "parallel" (and finally to default 2-buffering).
    configs = []
    if (rows_pad // tm) > 1 and hasattr(pltpu, "CORE_PARALLEL"):
        configs.append((pltpu.CORE_PARALLEL, True))
    configs += [("parallel", True), ("parallel", False)]
    out_t, err = None, None
    for sem, buffered in configs:
        try:
            out_t = call(sem, buffered)
            break
        except Exception as e:      # unsupported semantics / pipeline depth
            err = e
    if out_t is None:
        raise err

    # ---- unpack: out_t[m*PPR + q, r] = band m of patch (q*rows_pad + r) ------
    out_np = (out_t.reshape(M, PPR, rows_pad)
                   .transpose(1, 2, 0)                    # (PPR, rows_pad, M)
                   .reshape(np_pad, M))[:NP]
    out = out_np.reshape(N, oh, ow, M)
    return jnp.transpose(out, (0, 3, 1, 2))               # (N, M, sa, sa)


# --------------------------- pure-JAX reference ------------------------------

def lfs_head_reference(x, learnables, *, window_size, M):
    S = window_size
    xg = _grayscale_scaled(x)
    N = xg.shape[0]
    patches, out_h, out_w = _unfold_patches(xg, S)         # (N,oh,ow,1,S,S)
    L = out_h * out_w
    x_unfold = patches.reshape(N, L, 1, S, S)
    D = jnp.asarray(DCT_mat(S))
    hp = lax.Precision.HIGHEST
    x_dct = jnp.matmul(jnp.matmul(D, x_unfold, precision=hp), D.T, precision=hp)
    y_log = jnp.log10(jnp.abs(x_dct) + 1e-15)
    outs = []
    for m in range(M):
        base = jnp.asarray(generate_filter(S * 2.0 / M * m, S * 2.0 / M * (m + 1), S))
        ft_num = jnp.sum(base)
        filt = base + (2.0 * jax.nn.sigmoid(learnables[m]) - 1.0)
        y = jnp.sum(y_log * filt / ft_num, axis=(2, 3, 4))
        outs.append(y.reshape(N, out_h, out_w)[:, None])
    return jnp.concatenate(outs, axis=1)


if __name__ == "__main__":
    # Small deterministic config: 16x16 RGB images, 8x8 DCT windows, M=4 bands.
    window_size = 8
    M = 4
    N, H = 2, 16

    key = jax.random.PRNGKey(0)
    k_x, k_l = jax.random.split(key)
    x = jax.random.normal(k_x, (N, 3, H, H), dtype=jnp.float32)
    # Filter learnable params ~ N(0, 0.1), one (S, S) per band (PyTorch init).
    learnables = 0.1 * jax.random.normal(
        k_l, (M, window_size, window_size), dtype=jnp.float32)

    y = lfs_head_forward(x, learnables, window_size=window_size, M=M)
    y = jax.block_until_ready(y)

    y_ref = lfs_head_reference(x, learnables, window_size=window_size, M=M)
    y_ref = jax.block_until_ready(y_ref)

    assert y.shape == (N, M, 9, 9), y.shape
    # Both paths are f32-accurate; the loose-ish tolerance only guards against
    # log10(|dct|+1e-15) amplifying benign reassociation differences when a
    # DCT coefficient happens to land very close to zero (outputs are O(1)).
    np.testing.assert_allclose(np.asarray(y), np.asarray(y_ref),
                               rtol=2e-2, atol=3e-2)
    print("KERNEL_OK")
</pallas_src>

<mosaic_0001>
module attributes {stable_mosaic.version = 11 : i64} {
  func.func @_lfs_kernel(%arg0: i32, %arg1: memref<128x128xf32, #tpu.memory_space<vmem>>, %arg2: memref<128x128xf32, #tpu.memory_space<vmem>>, %arg3: memref<8x128xf32, #tpu.memory_space<vmem>>, %arg4: memref<8x128xf32, #tpu.memory_space<vmem>>) attributes {dimension_semantics = [#tpu.dimension_semantics<parallel>], iteration_bounds = array<i64: 1>, scalar_prefetch = 0 : i64, scratch_operands = 0 : i64, tpu.core_type = #tpu.core_type<tc>, window_params = [{transform_indices = @transform_0, window_bounds = array<i64: 128, 128>}, {pipeline_mode = #tpu.pipeline_mode<synchronous>, transform_indices = @transform_1, window_bounds = array<i64: 128, 128>}, {pipeline_mode = #tpu.pipeline_mode<synchronous>, transform_indices = @transform_2, window_bounds = array<i64: 8, 128>}, {transform_indices = @transform_3, window_bounds = array<i64: 8, 128>}]} {
    %c0 = arith.constant 0 : index
    %c0_0 = arith.constant 0 : index
    %0 = vector.load %arg2[%c0, %c0_0] : memref<128x128xf32, #tpu.memory_space<vmem>>, vector<128x128xf32>
    %c0_1 = arith.constant 0 : index
    %c0_2 = arith.constant 0 : index
    %1 = vector.load %arg1[%c0_1, %c0_2] : memref<128x128xf32, #tpu.memory_space<vmem>>, vector<128x128xf32>
    %cst = arith.constant dense<0.000000e+00> : vector<128x128xf32>
    %2 = tpu.matmul %0, %1, %cst {dimension_numbers = #tpu.dot_dimension_numbers<[1], [0], [0], [1], [0, 0, 1, 1], [], []>} : vector<128x128xf32>, vector<128x128xf32>, vector<128x128xf32> -> vector<128x128xf32>
    %3 = math.absf %2 : vector<128x128xf32>
    %cst_3 = arith.constant 1.000000e-15 : f32
    %4 = vector.broadcast %cst_3 : f32 to vector<128x128xf32>
    %5 = arith.addf %3, %4 : vector<128x128xf32>
    %6 = math.log %5 : vector<128x128xf32>
    %cst_4 = arith.constant 0.434294492 : f32
    %7 = vector.broadcast %cst_4 : f32 to vector<128x128xf32>
    %8 = arith.mulf %6, %7 : vector<128x128xf32>
    %c0_5 = arith.constant 0 : index
    %c0_6 = arith.constant 0 : index
    %9 = vector.load %arg3[%c0_5, %c0_6] : memref<8x128xf32, #tpu.memory_space<vmem>>, vector<8x128xf32>
    %cst_7 = arith.constant dense<0.000000e+00> : vector<8x128xf32>
    %10 = tpu.matmul %9, %8, %cst_7 {dimension_numbers = #tpu.dot_dimension_numbers<[1], [0], [0], [1], [0, 0, 1, 1], [], []>} : vector<8x128xf32>, vector<128x128xf32>, vector<8x128xf32> -> vector<8x128xf32>
    %c0_8 = arith.constant 0 : index
    %c0_9 = arith.constant 0 : index
    %11 = vector.load %arg4[%c0_8, %c0_9] : memref<8x128xf32, #tpu.memory_space<vmem>>, vector<8x128xf32>
    tpu.vector_store %arg4[%c0_8, %c0_9], %10 {strides = array<i32>} : memref<8x128xf32, #tpu.memory_space<vmem>>, vector<8x128xf32>,
    return
  }
  func.func @transform_0(%arg0: i32) -> (i32, i32) {
    %c0_i32 = arith.constant 0 : i32
    %c0_i32_0 = arith.constant 0 : i32
    return %c0_i32, %arg0 : i32, i32
  }
  func.func @transform_1(%arg0: i32) -> (i32, i32) {
    %c0_i32 = arith.constant 0 : i32
    %c0_i32_0 = arith.constant 0 : i32
    %c0_i32_1 = arith.constant 0 : i32
    return %c0_i32, %c0_i32_0 : i32, i32
  }
  func.func @transform_2(%arg0: i32) -> (i32, i32) {
    %c0_i32 = arith.constant 0 : i32
    %c0_i32_0 = arith.constant 0 : i32
    %c0_i32_1 = arith.constant 0 : i32
    return %c0_i32, %c0_i32_0 : i32, i32
  }
  func.func @transform_3(%arg0: i32) -> (i32, i32) {
    %c0_i32 = arith.constant 0 : i32
    %c0_i32_0 = arith.constant 0 : i32
    return %c0_i32, %arg0 : i32, i32
  }
}

</mosaic_0001>

<llo_original>
// kernel: tpu_custom_call.1
$region0: #{tpu_custom_call.1}
  #allocation0 [shape = 'u32[]', space=smem, size = 0x4, offset = 0x4, fixed_abs, tag = 'smem constant byte address 0x4 - core index']
  #allocation1 [shape = 'u32[144,128]{1,0:T(1,128)}', space=vmem, size = 0x12000, scoped, tag = 'internal scratch']
  %s0 = inlined_call_operand.hbm [shape: f32[128,128], index: 0, kind: input, shape index: {}]
  %s1 = inlined_call_operand.hbm [shape: f32[128,128], index: 1, kind: input, shape index: {}]
  %s2 = inlined_call_operand.hbm [shape: f32[8,128], index: 2, kind: input, shape index: {}]
  %s3 = inlined_call_operand.hbm [shape: f32[8,128], index: 3, kind: output, shape index: {}]
  %s4 = sld [smem:[#allocation0]]
  $region34: #{tpu_custom_call.1} parent=0
    _
  %s6 = ssub.s32 1, %s4
  %s7 = scalar_select 0, %s6, %s4
  $region1: #{tpu_custom_call.1} parent=0
    #allocation2 [shape = 'u8[65536]{0}', space=vmem, size = 0x10000, scoped, tag = 'input window, operand 0, single buffered']
    #allocation3 [shape = 's32[1]{0}', space=sflag, size = 0x4, scoped, tag = 'scoped memory for tpu_custom_call.1']
    #allocation4 [shape = 's32[1]{0}', space=sflag, size = 0x4, scoped, tag = 'scoped memory for tpu_custom_call.1']
    #allocation5 [shape = 'u8[65536]{0}', space=vmem, size = 0x10000, scoped, tag = 'input window, operand 1, single buffered']
    #allocation6 [shape = 's32[1]{0}', space=sflag, size = 0x4, scoped, tag = 'scoped memory for tpu_custom_call.1']
    #allocation7 [shape = 'u8[4096]{0}', space=vmem, size = 0x1000, scoped, tag = 'input window, operand 2, single buffered']
    #allocation8 [shape = 'u8[4096]{0}', space=vmem, size = 0x1000, scoped, tag = 'output window, operand 0, single buffered']
    %8 = vsyncpa [#allocation3], 0
    %9 = vsyncpa [#allocation6], 0
    %10 = vsyncpa [#allocation4], 0
    // Predicated region
    $region2: #{tpu_custom_call.1} parent=1 // pred_check
      _
    $region3: #{tpu_custom_call.1} parent=1 // pred_check_branch
      %12 = sbr.rel (0) target = $region5
    $region4: #{tpu_custom_call.1} parent=1 // pred_region
      %s14 = ssub.s32 2048, 2048
      %15 = vsyncadd [#allocation3], %s14
      %s16 = sshll.u32 [#allocation2], 4
      %s17 = int_to_ptr.vmem [resolvable:$true] %s16
      %22 = dma.hbm_to_vmem [thread:$0]  %s0, 2048, %s17, [#allocation3], 128, 128, 8
    $region5: #{tpu_custom_call.1} parent=1 // pred_fallthru
      _
    // Predicated region
    $region6: #{tpu_custom_call.1} parent=1 // pred_check
      _
    $region7: #{tpu_custom_call.1} parent=1 // pred_check_branch
      %24 = sbr.rel (0) target = $region9
    $region8: #{tpu_custom_call.1} parent=1 // pred_region
      %s26 = ssub.s32 2048, 2048
      %27 = vsyncadd [#allocation6], %s26
      %s28 = sshll.u32 [#allocation5], 4
      %s29 = int_to_ptr.vmem [resolvable:$true] %s28
      %34 = dma.hbm_to_vmem [thread:$0]  %s1, 2048, %s29, [#allocation6], 128, 128, 8
    $region9: #{tpu_custom_call.1} parent=1 // pred_fallthru
      _
    // Predicated region
    $region10: #{tpu_custom_call.1} parent=1 // pred_check
      _
    $region11: #{tpu_custom_call.1} parent=1 // pred_check_branch
      %36 = sbr.rel (0) target = $region13
    $region12: #{tpu_custom_call.1} parent=1 // pred_region
      %s38 = ssub.s32 128, 128
      %39 = vsyncadd [#allocation6], %s38
      %s41 = sshll.u32 [#allocation7], 4
      %s42 = int_to_ptr.vmem [resolvable:$true] %s41
      %44 = dma.hbm_to_vmem [thread:$0]  %s2, 128, %s42, [#allocation6]
    $region13: #{tpu_custom_call.1} parent=1 // pred_fallthru
      _
    // Predicated region
    $region14: #{tpu_custom_call.1} parent=1 // pred_check
      _
    $region15: #{tpu_custom_call.1} parent=1 // pred_check_branch
      %46 = sbr.rel (0) target = $region17
    $region16: #{tpu_custom_call.1} parent=1 // pred_region
      %47 = dma.done [#allocation3], 2048
    $region17: #{tpu_custom_call.1} parent=1 // pred_fallthru
      _
    // Predicated region
    $region18: #{tpu_custom_call.1} parent=1 // pred_check
      _
    $region19: #{tpu_custom_call.1} parent=1 // pred_check_branch
      %49 = sbr.rel (0) target = $region21
    $region20: #{tpu_custom_call.1} parent=1 // pred_region
      %50 = dma.done [#allocation6], 2048
    $region21: #{tpu_custom_call.1} parent=1 // pred_fallthru
      _
    // Predicated region
    $region22: #{tpu_custom_call.1} parent=1 // pred_check
      _
    $region23: #{tpu_custom_call.1} parent=1 // pred_check_branch
      %52 = sbr.rel (0) target = $region25
    $region24: #{tpu_custom_call.1} parent=1 // pred_region
      %53 = dma.done [#allocation6], 128
    $region25: #{tpu_custom_call.1} parent=1 // pred_fallthru
      _
    %v54 = vld [vmem:[#allocation5] sm:$0xff]
    %v55 = vld [vmem:[#allocation5 + $0x8] sm:$0xff]
    %v56 = vld [vmem:[#allocation5 + $0x10] sm:$0xff]
    %v57 = vld [vmem:[#allocation5 + $0x18] sm:$0xff]
    %v58 = vld [vmem:[#allocation5 + $0x20] sm:$0xff]
    %v59 = vld [vmem:[#allocation5 + $0x28] sm:$0xff]
    %v60 = vld [vmem:[#allocation5 + $0x30] sm:$0xff]
    %v61 = vld [vmem:[#allocation5 + $0x38] sm:$0xff]
    %v62 = vld [vmem:[#allocation5 + $0x40] sm:$0xff]
    %v63 = vld [vmem:[#allocation5 + $0x48] sm:$0xff]
    %v64 = vld [vmem:[#allocation5 + $0x50] sm:$0xff]
    %v65 = vld [vmem:[#allocation5 + $0x58] sm:$0xff]
    %v66 = vld [vmem:[#allocation5 + $0x60] sm:$0xff]
    %v67 = vld [vmem:[#allocation5 + $0x68] sm:$0xff]
    %v68 = vld [vmem:[#allocation5 + $0x70] sm:$0xff]
    %v69 = vld [vmem:[#allocation5 + $0x78] sm:$0xff]
    %v70 = vld [vmem:[#allocation2] sm:$0xff]
    %v71 = vld [vmem:[#allocation2 + $0x8] sm:$0xff]
    %v72 = vld [vmem:[#allocation2 + $0x10] sm:$0xff]
    %v73 = vld [vmem:[#allocation2 + $0x18] sm:$0xff]
    %v74 = vld [vmem:[#allocation2 + $0x20] sm:$0xff]
    %v75 = vld [vmem:[#allocation2 + $0x28] sm:$0xff]
    %v76 = vld [vmem:[#allocation2 + $0x30] sm:$0xff]
    %v77 = vld [vmem:[#allocation2 + $0x38] sm:$0xff]
    %v78 = vld [vmem:[#allocation2 + $0x40] sm:$0xff]
    %v79 = vld [vmem:[#allocation2 + $0x48] sm:$0xff]
    %v80 = vld [vmem:[#allocation2 + $0x50] sm:$0xff]
    %v81 = vld [vmem:[#allocation2 + $0x58] sm:$0xff]
    %v82 = vld [vmem:[#allocation2 + $0x60] sm:$0xff]
    %v83 = vld [vmem:[#allocation2 + $0x68] sm:$0xff]
    %v84 = vld [vmem:[#allocation2 + $0x70] sm:$0xff]
    %v85 = vld [vmem:[#allocation2 + $0x78] sm:$0xff]
    %86 = vmatprep.subr.mxu0 0.0
    %87 = vmatpush1.msra.mxu0 %v85
    %88 = vmatprep.subr.mxu0 0.0
    %89 = vmatpush1.msra.mxu0 %v84
    %90 = vmatprep.subr.mxu0 0.0
    %91 = vmatpush1.msra.mxu0 %v83
    %92 = vmatprep.subr.mxu0 0.0
    %93 = vmatpush1.msra.mxu0 %v82
    %94 = vmatprep.subr.mxu0 0.0
    %95 = vmatpush1.msra.mxu0 %v81
    %96 = vmatprep.subr.mxu0 0.0
    %97 = vmatpush1.msra.mxu0 %v80
    %98 = vmatprep.subr.mxu0 0.0
    %99 = vmatpush1.msra.mxu0 %v79
    %100 = vmatprep.subr.mxu0 0.0
    %101 = vmatpush1.msra.mxu0 %v78
    %102 = vmatprep.subr.mxu0 0.0
    %103 = vmatpush1.msra.mxu0 %v77
    %104 = vmatprep.subr.mxu0 0.0
    %105 = vmatpush1.msra.mxu0 %v76
    %106 = vmatprep.subr.mxu0 0.0
    %107 = vmatpush1.msra.mxu0 %v75
    %108 = vmatprep.subr.mxu0 0.0
    %109 = vmatpush1.msra.mxu0 %v74
    %110 = vmatprep.subr.mxu0 0.0
    %111 = vmatpush1.msra.mxu0 %v73
    %112 = vmatprep.subr.mxu0 0.0
    %113 = vmatpush1.msra.mxu0 %v72
    %114 = vmatprep.subr.mxu0 0.0
    %115 = vmatpush1.msra.mxu0 %v71
    %116 = vmatprep.subr.mxu0 0.0
    %117 = vmatpush1.msra.mxu0 %v70
    %118 = vmatprep.subr.mxu0 0.0
    %119 = vmatpush2.msra.mxu0 0.0
    %120 = vmatprep.subr.mxu0 0.0
    %121 = vmatpush2.msra.mxu0 0.0
    %122 = vmatprep.subr.mxu0 0.0
    %123 = vmatpush2.msra.mxu0 0.0
    %124 = vmatprep.subr.mxu0 0.0
    %125 = vmatpush2.msra.mxu0 0.0
    %126 = vmatprep.subr.mxu0 0.0
    %127 = vmatpush2.msra.mxu0 0.0
    %128 = vmatprep.subr.mxu0 0.0
    %129 = vmatpush2.msra.mxu0 0.0
    %130 = vmatprep.subr.mxu0 0.0
    %131 = vmatpush2.msra.mxu0 0.0
    %132 = vmatprep.subr.mxu0 0.0
    %133 = vmatpush2.msra.mxu0 0.0
    %134 = vmatprep.subr.mxu0 0.0
    %135 = vmatpush2.msra.mxu0 0.0
    %136 = vmatprep.subr.mxu0 0.0
    %137 = vmatpush2.msra.mxu0 0.0
    %138 = vmatprep.subr.mxu0 0.0
    %139 = vmatpush2.msra.mxu0 0.0
    %140 = vmatprep.subr.mxu0 0.0
    %141 = vmatpush2.msra.mxu0 0.0
    %142 = vmatprep.subr.mxu0 0.0
    %143 = vmatpush2.msra.mxu0 0.0
    %144 = vmatprep.subr.mxu0 0.0
    %145 = vmatpush2.msra.mxu0 0.0
    %146 = vmatprep.subr.mxu0 0.0
    %147 = vmatpush2.msra.mxu0 0.0
    %148 = vmatprep.subr.mxu0 0.0
    %149 = vmatpush2.msra.mxu0 0.0
    %150 = vmatprep.mubr.f32.mxu0 0.0
    %151 = vmatmul.mubr.f32.gmra.mxu0 %v54
    %v152 = vpop.f32.mrf.mxu0
    %v153 = vadd.f32 0.0, %v152
    %v154 = vpop.f32.mrf.mxu0
    %155 = vmatprep.mubr.f32.mxu0 0.0
    %156 = vmatmul.mubr.f32.gmra.mxu0 %v55
    %v157 = vpop.f32.mrf.mxu0
    %v158 = vadd.f32 0.0, %v157
    %v159 = vpop.f32.mrf.mxu0
    %160 = vmatprep.mubr.f32.mxu0 0.0
    %161 = vmatmul.mubr.f32.gmra.mxu0 %v56
    %v162 = vpop.f32.mrf.mxu0
    %v163 = vadd.f32 0.0, %v162
    %v164 = vpop.f32.mrf.mxu0
    %165 = vmatprep.mubr.f32.mxu0 0.0
    %166 = vmatmul.mubr.f32.gmra.mxu0 %v57
    %v167 = vpop.f32.mrf.mxu0
    %v168 = vadd.f32 0.0, %v167
    %v169 = vpop.f32.mrf.mxu0
    %170 = vmatprep.mubr.f32.mxu0 0.0
    %171 = vmatmul.mubr.f32.gmra.mxu0 %v58
    %v172 = vpop.f32.mrf.mxu0
    %v173 = vadd.f32 0.0, %v172
    %v174 = vpop.f32.mrf.mxu0
    %175 = vmatprep.mubr.f32.mxu0 0.0
    %176 = vmatmul.mubr.f32.gmra.mxu0 %v59
    %v177 = vpop.f32.mrf.mxu0
    %v178 = vadd.f32 0.0, %v177
    %v179 = vpop.f32.mrf.mxu0
    %180 = vmatprep.mubr.f32.mxu0 0.0
    %181 = vmatmul.mubr.f32.gmra.mxu0 %v60
    %v182 = vpop.f32.mrf.mxu0
    %v183 = vadd.f32 0.0, %v182
    %v184 = vpop.f32.mrf.mxu0
    %185 = vmatprep.mubr.f32.mxu0 0.0
    %186 = vmatmul.mubr.f32.gmra.mxu0 %v61
    %v187 = vpop.f32.mrf.mxu0
    %v188 = vadd.f32 0.0, %v187
    %v189 = vpop.f32.mrf.mxu0
    %190 = vmatprep.mubr.f32.mxu0 0.0
    %191 = vmatmul.mubr.f32.gmra.mxu0 %v62
    %v192 = vpop.f32.mrf.mxu0
    %v193 = vadd.f32 0.0, %v192
    %v194 = vpop.f32.mrf.mxu0
    %195 = vmatprep.mubr.f32.mxu0 0.0
    %196 = vmatmul.mubr.f32.gmra.mxu0 %v63
    %v197 = vpop.f32.mrf.mxu0
    %v198 = vadd.f32 0.0, %v197
    %v199 = vpop.f32.mrf.mxu0
    %200 = vmatprep.mubr.f32.mxu0 0.0
    %201 = vmatmul.mubr.f32.gmra.mxu0 %v64
    %v202 = vpop.f32.mrf.mxu0
    %v203 = vadd.f32 0.0, %v202
    %v204 = vpop.f32.mrf.mxu0
    %205 = vmatprep.mubr.f32.mxu0 0.0
    %206 = vmatmul.mubr.f32.gmra.mxu0 %v65
    %v207 = vpop.f32.mrf.mxu0
    %v208 = vadd.f32 0.0, %v207
    %v209 = vpop.f32.mrf.mxu0
    %210 = vmatprep.mubr.f32.mxu0 0.0
    %211 = vmatmul.mubr.f32.gmra.mxu0 %v66
    %v212 = vpop.f32.mrf.mxu0
    %v213 = vadd.f32 0.0, %v212
    %v214 = vpop.f32.mrf.mxu0
    %215 = vmatprep.mubr.f32.mxu0 0.0
    %216 = vmatmul.mubr.f32.gmra.mxu0 %v67
    %v217 = vpop.f32.mrf.mxu0
    %v218 = vadd.f32 0.0, %v217
    %v219 = vpop.f32.mrf.mxu0
    %220 = vmatprep.mubr.f32.mxu0 0.0
    %221 = vmatmul.mubr.f32.gmra.mxu0 %v68
    %v222 = vpop.f32.mrf.mxu0
    %v223 = vadd.f32 0.0, %v222
    %v224 = vpop.f32.mrf.mxu0
    %225 = vmatprep.mubr.f32.mxu0 0.0
    %226 = vmatmul.mubr.f32.gmra.mxu0 %v69
    %v227 = vpop.f32.mrf.mxu0
    %v228 = vadd.f32 0.0, %v227
    %v229 = vpop.f32.mrf.mxu0
    %230 = vdwg.mxu0
    %v231 = vand.u32 2147483647, %v153
    %v232 = vand.u32 2147483647, %v158
    %v233 = vand.u32 2147483647, %v163
    %v234 = vand.u32 2147483647, %v168
    %v235 = vand.u32 2147483647, %v173
    %v236 = vand.u32 2147483647, %v178
    %v237 = vand.u32 2147483647, %v183
    %v238 = vand.u32 2147483647, %v188
    %v239 = vand.u32 2147483647, %v193
    %v240 = vand.u32 2147483647, %v198
    %v241 = vand.u32 2147483647, %v203
    %v242 = vand.u32 2147483647, %v208
    %v243 = vand.u32 2147483647, %v213
    %v244 = vand.u32 2147483647, %v218
    %v245 = vand.u32 2147483647, %v223
    %v246 = vand.u32 2147483647, %v228
    %v247 = vadd.f32 %v231, 1e-15
    %v248 = vadd.f32 %v232, 1e-15
    %v249 = vadd.f32 %v233, 1e-15
    %v250 = vadd.f32 %v234, 1e-15
    %v251 = vadd.f32 %v235, 1e-15
    %v252 = vadd.f32 %v236, 1e-15
    %v253 = vadd.f32 %v237, 1e-15
    %v254 = vadd.f32 %v238, 1e-15
    %v255 = vadd.f32 %v239, 1e-15
    %v256 = vadd.f32 %v240, 1e-15
    %v257 = vadd.f32 %v241, 1e-15
    %v258 = vadd.f32 %v242, 1e-15
    %v259 = vadd.f32 %v243, 1e-15
    %v260 = vadd.f32 %v244, 1e-15
    %v261 = vadd.f32 %v245, 1e-15
    %v262 = vadd.f32 %v246, 1e-15
    %v263 = vlog2.pop %v247
    %v264 = vmul.f32 %v263, 0.6931472
    %v265 = vlog2.pop %v248
    %v266 = vmul.f32 %v265, 0.6931472
    %v267 = vlog2.pop %v249
    %v268 = vmul.f32 %v267, 0.6931472
    %v269 = vlog2.pop %v250
    %v270 = vmul.f32 %v269, 0.6931472
    %v271 = vlog2.pop %v251
    %v272 = vmul.f32 %v271, 0.6931472
    %v273 = vlog2.pop %v252
    %v274 = vmul.f32 %v273, 0.6931472
    %v275 = vlog2.pop %v253
    %v276 = vmul.f32 %v275, 0.6931472
    %v277 = vlog2.pop %v254
    %v278 = vmul.f32 %v277, 0.6931472
    %v279 = vlog2.pop %v255
    %v280 = vmul.f32 %v279, 0.6931472
    %v281 = vlog2.pop %v256
    %v282 = vmul.f32 %v281, 0.6931472
    %v283 = vlog2.pop %v257
    %v284 = vmul.f32 %v283, 0.6931472
    %v285 = vlog2.pop %v258
    %v286 = vmul.f32 %v285, 0.6931472
    %v287 = vlog2.pop %v259
    %v288 = vmul.f32 %v287, 0.6931472
    %v289 = vlog2.pop %v260
    %v290 = vmul.f32 %v289, 0.6931472
    %v291 = vlog2.pop %v261
    %v292 = vmul.f32 %v291, 0.6931472
    %v293 = vlog2.pop %v262
    %v294 = vmul.f32 %v293, 0.6931472
    %v295 = vmul.f32 %v264, 0.4342945
    %v296 = vmul.f32 %v266, 0.4342945
    %v297 = vmul.f32 %v268, 0.4342945
    %v298 = vmul.f32 %v270, 0.4342945
    %v299 = vmul.f32 %v272, 0.4342945
    %v300 = vmul.f32 %v274, 0.4342945
    %v301 = vmul.f32 %v276, 0.4342945
    %v302 = vmul.f32 %v278, 0.4342945
    %v303 = vmul.f32 %v280, 0.4342945
    %v304 = vmul.f32 %v282, 0.4342945
    %v305 = vmul.f32 %v284, 0.4342945
    %v306 = vmul.f32 %v286, 0.4342945
    %v307 = vmul.f32 %v288, 0.4342945
    %v308 = vmul.f32 %v290, 0.4342945
    %v309 = vmul.f32 %v292, 0.4342945
    %v310 = vmul.f32 %v294, 0.4342945
    %v311 = vld [vmem:[#allocation7] sm:$0xff]
    %312 = vmatprep.subr.mxu0 0.0
    %313 = vmatpush1.msra.mxu0 %v310
    %314 = vmatprep.subr.mxu0 0.0
    %315 = vmatpush1.msra.mxu0 %v309
    %316 = vmatprep.subr.mxu0 0.0
    %317 = vmatpush1.msra.mxu0 %v308
    %318 = vmatprep.subr.mxu0 0.0
    %319 = vmatpush1.msra.mxu0 %v307
    %320 = vmatprep.subr.mxu0 0.0
    %321 = vmatpush1.msra.mxu0 %v306
    %322 = vmatprep.subr.mxu0 0.0
    %323 = vmatpush1.msra.mxu0 %v305
    %324 = vmatprep.subr.mxu0 0.0
    %325 = vmatpush1.msra.mxu0 %v304
    %326 = vmatprep.subr.mxu0 0.0
    %327 = vmatpush1.msra.mxu0 %v303
    %328 = vmatprep.subr.mxu0 0.0
    %329 = vmatpush1.msra.mxu0 %v302
    %330 = vmatprep.subr.mxu0 0.0
    %331 = vmatpush1.msra.mxu0 %v301
    %332 = vmatprep.subr.mxu0 0.0
    %333 = vmatpush1.msra.mxu0 %v300
    %334 = vmatprep.subr.mxu0 0.0
    %335 = vmatpush1.msra.mxu0 %v299
    %336 = vmatprep.subr.mxu0 0.0
    %337 = vmatpush1.msra.mxu0 %v298
    %338 = vmatprep.subr.mxu0 0.0
    %339 = vmatpush1.msra.mxu0 %v297
    %340 = vmatprep.subr.mxu0 0.0
    %341 = vmatpush1.msra.mxu0 %v296
    %342 = vmatprep.subr.mxu0 0.0
    %343 = vmatpush1.msra.mxu0 %v295
    %344 = vmatprep.subr.mxu0 0.0
    %345 = vmatpush2.msra.mxu0 0.0
    %346 = vmatprep.subr.mxu0 0.0
    %347 = vmatpush2.msra.mxu0 0.0
    %348 = vmatprep.subr.mxu0 0.0
    %349 = vmatpush2.msra.mxu0 0.0
    %350 = vmatprep.subr.mxu0 0.0
    %351 = vmatpush2.msra.mxu0 0.0
    %352 = vmatprep.subr.mxu0 0.0
    %353 = vmatpush2.msra.mxu0 0.0
    %354 = vmatprep.subr.mxu0 0.0
    %355 = vmatpush2.msra.mxu0 0.0
    %356 = vmatprep.subr.mxu0 0.0
    %357 = vmatpush2.msra.mxu0 0.0
    %358 = vmatprep.subr.mxu0 0.0
    %359 = vmatpush2.msra.mxu0 0.0
    %360 = vmatprep.subr.mxu0 0.0
    %361 = vmatpush2.msra.mxu0 0.0
    %362 = vmatprep.subr.mxu0 0.0
    %363 = vmatpush2.msra.mxu0 0.0
    %364 = vmatprep.subr.mxu0 0.0
    %365 = vmatpush2.msra.mxu0 0.0
    %366 = vmatprep.subr.mxu0 0.0
    %367 = vmatpush2.msra.mxu0 0.0
    %368 = vmatprep.subr.mxu0 0.0
    %369 = vmatpush2.msra.mxu0 0.0
    %370 = vmatprep.subr.mxu0 0.0
    %371 = vmatpush2.msra.mxu0 0.0
    %372 = vmatprep.subr.mxu0 0.0
    %373 = vmatpush2.msra.mxu0 0.0
    %374 = vmatprep.subr.mxu0 0.0
    %375 = vmatpush2.msra.mxu0 0.0
    %376 = vmatprep.mubr.f32.mxu0 0.0
    %377 = vmatmul.mubr.f32.gmra.mxu0 %v311
    %v378 = vpop.f32.mrf.mxu0
    %v379 = vadd.f32 0.0, %v378
    %v380 = vpop.f32.mrf.mxu0
    %381 = vdwg.mxu0
    %382 = vst [vmem:[#allocation8] sm:$0xff] %v379
    // Predicated region
    $region26: #{tpu_custom_call.1} parent=1 // pred_check
      _
    $region27: #{tpu_custom_call.1} parent=1 // pred_check_branch
      %384 = sbr.rel (0) target = $region29
    $region28: #{tpu_custom_call.1} parent=1 // pred_region
      %s386 = ssub.s32 128, 128
      %387 = vsyncadd [#allocation4], %s386
      %s389 = sshll.u32 [#allocation8], 4
      %s390 = int_to_ptr.vmem [resolvable:$true] %s389
      %392 = dma.vmem_to_hbm [thread:$0]  %s390, 128, %s3, [#allocation4]
    $region29: #{tpu_custom_call.1} parent=1 // pred_fallthru
      _
    // Predicated region
    $region30: #{tpu_custom_call.1} parent=1 // pred_check
      _
    $region31: #{tpu_custom_call.1} parent=1 // pred_check_branch
      %394 = sbr.rel (0) target = $region33
    $region32: #{tpu_custom_call.1} parent=1 // pred_region
      %395 = dma.done [#allocation4], 128
    $region33: #{tpu_custom_call.1} parent=1 // pred_fallthru
      _
    %396 = vsyncpa [#allocation3], 1
    %397 = vsyncpa [#allocation6], 1
    %398 = vsyncpa [#allocation4], 1

</llo_original>
